<compile_context>
chip_gen: v7x
topology: tpu7x:2x2x1
jax: 0.10.0
libtpu: 0.0.40
codegen_flags: <defaults>
</compile_context>

<pallas_src>
import functools

import jax
import jax.numpy as jnp
import numpy as np
from jax import lax
from jax.experimental import pallas as pl
from jax.experimental.pallas import tpu as pltpu

_VMEM_LIMIT = 32 * 1024 * 1024    # safe on v5e/v6e (128 MiB) and v7x (64 MiB)
_BLOCK_BYTES = 2 * 1024 * 1024    # ~2 MiB main block -> ~85%+ of HBM roofline
_P_FUSE_BYTES = 2 * 1024 * 1024   # p_scores kept resident in VMEM below this
_NCORES = 2                       # leading "parallel" axis (v7x has 2 TCs)


def _cdiv(a, b):
    return -(-a // b)


def _round_up(a, b):
    return _cdiv(a, b) * b


def _as_2d(x):
    # Collapse leading dims only (layout-free on TPU); keep the softmax axis.
    if x.ndim == 0:
        return x.reshape(1, 1)
    if x.ndim == 1:
        return x.reshape(1, x.shape[0])
    return x.reshape(-1, x.shape[-1])


def _softplus(x):
    # softplus(x) = max(x, 0) + log1p(exp(-|x|))   (numerically stable)
    return jnp.maximum(x, 0.0) + jnp.log1p(jnp.exp(-jnp.abs(x)))


def _plan(rows, cols, itemsize, block_bytes):
    """Row-tile size + 2-core split for a (rows, cols) array (all static)."""
    bytes_per_row = max(cols * itemsize, 1)
    tile = max((block_bytes // bytes_per_row) // 8 * 8, 8)
    tile = min(tile, _round_up(rows, 8))
    nblocks = _cdiv(rows, tile)               # logical blocks covering all rows
    ncores = _NCORES if nblocks >= _NCORES else 1
    spc = _cdiv(nblocks, ncores)              # grid steps per core
    full_blocks = rows // tile                # blocks with no invalid rows
    mask_any = (ncores * spc) > full_blocks   # static: any edge block at all?
    return tile, ncores, spc, full_blocks, mask_any, nblocks


def _accumulate(o_ref, loss, *, logical_idx, tile_rows, valid_rows,
                full_blocks, mask_any):
    """Accumulate per-column partial sums into row 0 of this core's block."""
    def _colsum(v):
        return jnp.sum(v, axis=0, keepdims=True)

    if not mask_any:
        o_ref[0:1, :] += _colsum(loss)
        return

    @pl.when(logical_idx < full_blocks)        # interior block: no mask work
    def _():
        o_ref[0:1, :] += _colsum(loss)

    @pl.when(logical_idx >= full_blocks)       # tail / duplicated block only
    def _():
        rows = (logical_idx * tile_rows
                + lax.broadcasted_iota(jnp.int32, loss.shape, 0))
        o_ref[0:1, :] += _colsum(jnp.where(rows < valid_rows, loss, 0.0))


def _emit_p_term(p_ref, p_out_ref, core_id):
    # -logsigmoid(p) = softplus(-p); reduced once per core (only core 0 kept).
    pval = jnp.sum(_softplus(-p_ref[...].astype(jnp.float32)))
    p_out_ref[...] = jnp.broadcast_to(jnp.where(core_id == 0, pval, 0.0),
                                      p_out_ref.shape)


# ---------------------------------------------------------------------------
# Kernel 1: plain softplus(+/-x) sum over the gridded main input, with the p
# term fused in as a resident side block.
# ---------------------------------------------------------------------------
def _plain_kernel(main_ref, p_ref, o_ref, p_out_ref, *, negate_main,
                  tile_rows, valid_rows, steps_per_core, full_blocks, mask_any):
    c = pl.program_id(0)
    i = pl.program_id(1)

    @pl.when(i == 0)
    def _():
        o_ref[...] = jnp.zeros_like(o_ref)
        _emit_p_term(p_ref, p_out_ref, c)

    x = main_ref[...].astype(jnp.float32)
    if negate_main:
        x = -x
    loss = _softplus(x)                       # -logsigmoid(-x) == softplus(x)
    _accumulate(o_ref, loss, logical_idx=c * steps_per_core + i,
                tile_rows=tile_rows, valid_rows=valid_rows,
                full_blocks=full_blocks, mask_any=mask_any)


# ---------------------------------------------------------------------------
# Kernel 2: adversarial branch.  Per row: w = softmax(adv_t * n, axis=-1),
# accumulate sum(softplus(w * n)); p term fused in as above.
# ---------------------------------------------------------------------------
def _adv_kernel(n_ref, p_ref, o_ref, p_out_ref, *, adv_temperature,
                tile_rows, valid_rows, steps_per_core, full_blocks, mask_any):
    c = pl.program_id(0)
    i = pl.program_id(1)

    @pl.when(i == 0)
    def _():
        o_ref[...] = jnp.zeros_like(o_ref)
        _emit_p_term(p_ref, p_out_ref, c)

    n = n_ref[...].astype(jnp.float32)                    # (tile, K)
    logits = adv_temperature * n
    m = jnp.max(logits, axis=-1, keepdims=True)
    e = jnp.exp(logits - m)
    inv = 1.0 / jnp.sum(e, axis=-1, keepdims=True)        # per-row reciprocal
    loss = _softplus((e * inv) * n)                       # -logsigmoid(-(w*n))
    _accumulate(o_ref, loss, logical_idx=c * steps_per_core + i,
                tile_rows=tile_rows, valid_rows=valid_rows,
                full_blocks=full_blocks, mask_any=mask_any)


# ---------------------------------------------------------------------------
# Shared launcher: ("parallel", "arbitrary") grid, per-core (8, C) accumulator,
# no padding (tail masked in-kernel, fully-OOB duplicate blocks clamped).
# ---------------------------------------------------------------------------
def _launch(kernel_body, main, side, *, block_bytes, static_kwargs,
            flops_per_el, trans_per_el):
    rows, cols = main.shape
    tile, ncores, spc, full_blocks, mask_any, nblocks = _plan(
        rows, cols, main.dtype.itemsize, block_bytes)

    kernel = functools.partial(
        kernel_body, tile_rows=tile, valid_rows=rows, steps_per_core=spc,
        full_blocks=full_blocks, mask_any=mask_any, **static_kwargs)

    # Clamp the logical block index so duplicated steps (odd block count split
    # across 2 cores) never issue a fully out-of-bounds DMA; they are masked.
    main_spec = pl.BlockSpec(
        (tile, cols),
        lambda c, i: (jnp.minimum(c * spc + i, nblocks - 1), 0))
    side_spec = pl.BlockSpec(side.shape, lambda c, i: (0, 0))   # resident p

    out_shape = (jax.ShapeDtypeStruct((8 * ncores, cols), jnp.float32),
                 jax.ShapeDtypeStruct((8 * ncores, 128), jnp.float32))
    out_specs = (pl.BlockSpec((8, cols), lambda c, i: (c, 0)),
                 pl.BlockSpec((8, 128), lambda c, i: (c, 0)))

    bytes_accessed = (main.size * main.dtype.itemsize
                      + side.size * side.dtype.itemsize
                      + 8 * ncores * (cols + 128) * 4)
    return pl.pallas_call(
        kernel,
        out_shape=out_shape,
        grid=(ncores, spc),
        in_specs=[main_spec, side_spec],
        out_specs=out_specs,
        compiler_params=pltpu.CompilerParams(
            dimension_semantics=("parallel", "arbitrary"),
            vmem_limit_bytes=_VMEM_LIMIT),
        cost_estimate=pl.CostEstimate(
            flops=int(flops_per_el * main.size + 4 * side.size),
            transcendentals=int(trans_per_el * main.size + 2 * side.size),
            bytes_accessed=int(bytes_accessed)),
    )(main, side)


# ---------------------------------------------------------------------------
# Public wrapper (== SigmoidLoss.forward; .detach() is a no-op in forward)
# ---------------------------------------------------------------------------
def sigmoid_loss(p_scores, n_scores, adv_temperature=None, *,
                 block_bytes=_BLOCK_BYTES):
    """Returns ((p_loss + n_loss) / 2, p_loss, n_loss) as f32 scalars."""
    p2 = _as_2d(p_scores)
    n2 = _as_2d(n_scores)
    dummy = jnp.zeros((1, 1), jnp.float32)
    fuse_p = p2.size * p2.dtype.itemsize <= _P_FUSE_BYTES
    side = p2 if fuse_p else dummy

    if adv_temperature:        # torch truthiness: None / 0 -> plain branch
        n_partials, p_partials = _launch(
            _adv_kernel, n2, side, block_bytes=block_bytes,
            static_kwargs=dict(adv_temperature=float(adv_temperature)),
            flops_per_el=12, trans_per_el=3)
    else:
        n_partials, p_partials = _launch(
            _plain_kernel, n2, side, block_bytes=block_bytes,
            static_kwargs=dict(negate_main=False),
            flops_per_el=8, trans_per_el=2)

    n_sum = jnp.sum(n_partials)
    if fuse_p:
        p_sum = p_partials[0, 0]       # core-0 block is a splat of the p sum
    else:
        # p too large to keep resident: one more identically-structured launch.
        pp, _ = _launch(_plain_kernel, p2, dummy, block_bytes=block_bytes,
                        static_kwargs=dict(negate_main=True),
                        flops_per_el=8, trans_per_el=2)
        p_sum = jnp.sum(pp)

    p_loss = p_sum / jnp.float32(p_scores.size)
    n_loss = n_sum / jnp.float32(n_scores.size)
    return (p_loss + n_loss) * jnp.float32(0.5), p_loss, n_loss


def _reference(p_scores, n_scores, adv_temperature=None):
    p = jnp.asarray(p_scores, jnp.float32)
    n = jnp.asarray(n_scores, jnp.float32)
    if adv_temperature:
        w = jax.nn.softmax(adv_temperature * n, axis=-1)
        n = w * n
    p_loss = -jnp.mean(jax.nn.log_sigmoid(p))
    n_loss = -jnp.mean(jax.nn.log_sigmoid(-n))
    return (p_loss + n_loss) / 2.0, p_loss, n_loss


if __name__ == "__main__":
    def _check(p, n, adv_t, **kw):
        outs = jax.block_until_ready(
            sigmoid_loss(p, n, adv_temperature=adv_t, **kw))
        refs = _reference(p, n, adv_temperature=adv_t)
        return all(np.allclose(np.asarray(o), np.asarray(r),
                               rtol=1e-5, atol=1e-5)
                   for o, r in zip(outs, refs))

    kp, kn, kp2, kn2 = jax.random.split(jax.random.PRNGKey(0), 4)

    # Shapes consistent with the module: batch=8, 1 positive, 32 negatives.
    p_small = jax.random.normal(kp, (8, 1), dtype=jnp.float32) * 2.0
    n_small = jax.random.normal(kn, (8, 32), dtype=jnp.float32) * 2.0

    # Odd-sized case with a tiny block budget: exercises the multi-step grid,
    # the 2-way core split, the pl.when-gated tail masking and the clamped
    # duplicate block.
    p_big = jax.random.normal(kp2, (37, 64), dtype=jnp.float32) * 2.0
    n_big = jax.random.normal(kn2, (37, 32), dtype=jnp.float32) * 2.0

    results = [
        _check(p_small, n_small, None),
        _check(p_small, n_small, 1.0),
        _check(p_big, n_big, None, block_bytes=1024),
        _check(p_big, n_big, 0.5, block_bytes=1024),
    ]
    print("KERNEL_OK" if all(results) else "MISMATCH")
</pallas_src>

<mosaic_0001>
module attributes {stable_mosaic.version = 11 : i64} {
  func.func @_plain_kernel(%arg0: i32, %arg1: i32, %arg2: memref<8x32xf32, #tpu.memory_space<vmem>>, %arg3: memref<8x1xf32, #tpu.memory_space<vmem>>, %arg4: memref<8x32xf32, #tpu.memory_space<vmem>>, %arg5: memref<8x128xf32, #tpu.memory_space<vmem>>) attributes {dimension_semantics = [#tpu.dimension_semantics<parallel>, #tpu.dimension_semantics<arbitrary>], iteration_bounds = array<i64: 1, 1>, scalar_prefetch = 0 : i64, scratch_operands = 0 : i64, tpu.core_type = #tpu.core_type<tc>, window_params = [{transform_indices = @transform_0, window_bounds = array<i64: 8, 32>}, {pipeline_mode = #tpu.pipeline_mode<synchronous>, transform_indices = @transform_1, window_bounds = array<i64: 8, 1>}, {transform_indices = @transform_2, window_bounds = array<i64: 8, 32>}, {transform_indices = @transform_3, window_bounds = array<i64: 8, 128>}]} {
    %c0_i32 = arith.constant 0 : i32
    %0 = arith.cmpi eq, %arg1, %c0_i32 : i32
    %1 = arith.extui %0 : i1 to i32
    %c0_i32_0 = arith.constant 0 : i32
    %2 = arith.cmpi ne, %1, %c0_i32_0 : i32
    scf.if %2 {
      %cst_8 = arith.constant 0.000000e+00 : f32
      %17 = vector.broadcast %cst_8 : f32 to vector<8x32xf32>
      %c0_9 = arith.constant 0 : index
      %c0_10 = arith.constant 0 : index
      %18 = vector.load %arg4[%c0_9, %c0_10] : memref<8x32xf32, #tpu.memory_space<vmem>>, vector<8x32xf32>
      tpu.vector_store %arg4[%c0_9, %c0_10], %17 {strides = array<i32>} : memref<8x32xf32, #tpu.memory_space<vmem>>, vector<8x32xf32>,
      %c0_11 = arith.constant 0 : index
      %c0_12 = arith.constant 0 : index
      %19 = vector.load %arg3[%c0_11, %c0_12] : memref<8x1xf32, #tpu.memory_space<vmem>>, vector<8x1xf32>
      %cst_13 = arith.constant 0.000000e+00 : f32
      %20 = vector.broadcast %cst_13 : f32 to vector<8x1xf32>
      %21 = arith.subf %20, %19 : vector<8x1xf32>
      %cst_14 = arith.constant 0.000000e+00 : f32
      %22 = vector.broadcast %cst_14 : f32 to vector<8x1xf32>
      %23 = arith.maximumf %21, %22 : vector<8x1xf32>
      %24 = math.absf %21 : vector<8x1xf32>
      %cst_15 = arith.constant 0.000000e+00 : f32
      %25 = vector.broadcast %cst_15 : f32 to vector<8x1xf32>
      %26 = arith.subf %25, %24 : vector<8x1xf32>
      %27 = math.exp %26 : vector<8x1xf32>
      %28 = math.log1p %27 : vector<8x1xf32>
      %29 = arith.addf %23, %28 : vector<8x1xf32>
      %30 = vector.shape_cast %29 : vector<8x1xf32> to vector<1x8x1xf32>
      %cst_16 = arith.constant dense<0.000000e+00> : vector<1xf32>
      %31 = vector.multi_reduction <add>, %30, %cst_16 [1, 2] : vector<1x8x1xf32> to vector<1xf32>
      %32 = vector.shape_cast %31 : vector<1xf32> to vector<1x1x1xf32>
      %33 = vector.extract %32[0, 0, 0] : f32 from vector<1x1x1xf32>
      %c0_i32_17 = arith.constant 0 : i32
      %34 = arith.cmpi eq, %arg0, %c0_i32_17 : i32
      %cst_18 = arith.constant 0.000000e+00 : f32
      %35 = arith.select %34, %33, %cst_18 : f32
      %36 = vector.broadcast %35 : f32 to vector<8x128xf32>
      %c0_19 = arith.constant 0 : index
      %c0_20 = arith.constant 0 : index
      %37 = vector.load %arg5[%c0_19, %c0_20] : memref<8x128xf32, #tpu.memory_space<vmem>>, vector<8x128xf32>
      tpu.vector_store %arg5[%c0_19, %c0_20], %36 {strides = array<i32>} : memref<8x128xf32, #tpu.memory_space<vmem>>, vector<8x128xf32>,
    } else {
    }
    %c0 = arith.constant 0 : index
    %c0_1 = arith.constant 0 : index
    %3 = vector.load %arg2[%c0, %c0_1] : memref<8x32xf32, #tpu.memory_space<vmem>>, vector<8x32xf32>
    %cst = arith.constant 0.000000e+00 : f32
    %4 = vector.broadcast %cst : f32 to vector<8x32xf32>
    %5 = arith.maximumf %3, %4 : vector<8x32xf32>
    %6 = math.absf %3 : vector<8x32xf32>
    %cst_2 = arith.constant 0.000000e+00 : f32
    %7 = vector.broadcast %cst_2 : f32 to vector<8x32xf32>
    %8 = arith.subf %7, %6 : vector<8x32xf32>
    %9 = math.exp %8 : vector<8x32xf32>
    %10 = math.log1p %9 : vector<8x32xf32>
    %11 = arith.addf %5, %10 : vector<8x32xf32>
    %c0_3 = arith.constant 0 : index
    %c0_4 = arith.constant 0 : index
    %12 = vector.load %arg4[%c0_3, %c0_4] : memref<8x32xf32, #tpu.memory_space<vmem>>, vector<1x32xf32>
    %cst_5 = arith.constant dense<0.000000e+00> : vector<32xf32>
    %13 = vector.multi_reduction <add>, %11, %cst_5 [0] : vector<8x32xf32> to vector<32xf32>
    %14 = vector.shape_cast %13 : vector<32xf32> to vector<1x32xf32>
    %15 = arith.addf %12, %14 : vector<1x32xf32>
    %c0_6 = arith.constant 0 : index
    %c0_7 = arith.constant 0 : index
    %16 = vector.load %arg4[%c0_6, %c0_7] : memref<8x32xf32, #tpu.memory_space<vmem>>, vector<1x32xf32>
    tpu.vector_store %arg4[%c0_6, %c0_7], %15 {strides = array<i32>} : memref<8x32xf32, #tpu.memory_space<vmem>>, vector<1x32xf32>,
    return
  }
  func.func @transform_0(%arg0: i32, %arg1: i32) -> (i32, i32) {
    %c1_i32 = arith.constant 1 : i32
    %0 = arith.muli %arg0, %c1_i32 : i32
    %1 = arith.addi %0, %arg1 : i32
    %c0_i32 = arith.constant 0 : i32
    %2 = arith.minsi %1, %c0_i32 : i32
    %c0_i32_0 = arith.constant 0 : i32
    %c0_i32_1 = arith.constant 0 : i32
    return %2, %c0_i32_0 : i32, i32
  }
  func.func @transform_1(%arg0: i32, %arg1: i32) -> (i32, i32) {
    %c0_i32 = arith.constant 0 : i32
    %c0_i32_0 = arith.constant 0 : i32
    %c0_i32_1 = arith.constant 0 : i32
    return %c0_i32, %c0_i32_0 : i32, i32
  }
  func.func @transform_2(%arg0: i32, %arg1: i32) -> (i32, i32) {
    %c0_i32 = arith.constant 0 : i32
    %c0_i32_0 = arith.constant 0 : i32
    return %arg0, %c0_i32 : i32, i32
  }
  func.func @transform_3(%arg0: i32, %arg1: i32) -> (i32, i32) {
    %c0_i32 = arith.constant 0 : i32
    %c0_i32_0 = arith.constant 0 : i32
    return %arg0, %c0_i32 : i32, i32
  }
}

</mosaic_0001>

<llo_original>
// kernel: tpu_custom_call.1
$region0: #{tpu_custom_call.1}
  #allocation0 [shape = 'u32[]', space=smem, size = 0x4, offset = 0x4, fixed_abs, tag = 'smem constant byte address 0x4 - core index']
  #allocation1 [shape = 'u32[144,128]{1,0:T(1,128)}', space=vmem, size = 0x12000, scoped, tag = 'internal scratch']
  %s0 = inlined_call_operand.vmem [shape: f32[8,32], index: 0, kind: input, shape index: {}]
  %s1 = inlined_call_operand.vmem [shape: f32[8,1], index: 1, kind: input, shape index: {}]
  %s2 = inlined_call_operand.hbm [shape: f32[8,32], index: 2, kind: output, shape index: {0}]
  %s3 = inlined_call_operand.hbm [shape: f32[8,128], index: 3, kind: output, shape index: {1}]
  %4 = xla_tuple %s2, %s3
  %s5 = sld [smem:[#allocation0]]
  $region30: #{tpu_custom_call.1} parent=0
    _
  %s7 = ssub.s32 1, %s5
  %s8 = scalar_select 0, %s7, %s5
  $region1: #{tpu_custom_call.1} parent=0
    #allocation2 [shape = 'u8[4096]{0}', space=vmem, size = 0x1000, scoped, tag = 'output window, operand 0, single buffered']
    #allocation3 [shape = 's32[1]{0}', space=sflag, size = 0x4, scoped, tag = 'scoped memory for tpu_custom_call.1']
    #allocation4 [shape = 'u8[4096]{0}', space=vmem, size = 0x1000, scoped, tag = 'output window, operand 1, single buffered']
    #allocation5 [shape = 's32[1]{0}', space=sflag, size = 0x4, scoped, tag = 'scoped memory for tpu_custom_call.1']
    %9 = vsyncpa [#allocation3], 0
    %10 = vsyncpa [#allocation5], 0
    // Predicated region
    $region2: #{tpu_custom_call.1} parent=1 // pred_check
      _
    $region3: #{tpu_custom_call.1} parent=1 // pred_check_branch
      %12 = sbr.rel (0) target = $region5
    $region4: #{tpu_custom_call.1} parent=1 // pred_region
      %s13 = sadd.s32 0, 0
      %p14 = scmp.lt.s32.totalorder %s13, 0
      %s15 = scalar_select %p14, %s13, 0
      %p16 = scmp.lt.s32.totalorder %s15, 0
      %s17 = scalar_select %p16, %s15, 0
      %s18 = smul.addr %s17, 8
      %s19 = scalar_lea.vmem %s0, %s18
      %s20 = sadd.s32 0, 0
      %p21 = scmp.lt.s32.totalorder %s20, 0
      %s22 = scalar_select %p21, %s20, 0
    $region5: #{tpu_custom_call.1} parent=1 // pred_fallthru
      _
    // Predicated region
    $region6: #{tpu_custom_call.1} parent=1 // pred_check
      _
    $region7: #{tpu_custom_call.1} parent=1 // pred_check_branch
      %24 = sbr.rel (0) target = $region9
    $region8: #{tpu_custom_call.1} parent=1 // pred_region
      _
    $region9: #{tpu_custom_call.1} parent=1 // pred_fallthru
      _
    %s25 = sadd.s32 0, 0
    %p26 = scmp.lt.s32.totalorder %s25, 0
    %s27 = scalar_select %p26, %s25, 0
    %p28 = scmp.lt.s32.totalorder %s27, 0
    %s29 = scalar_select %p28, %s27, 0
    %s30 = smul.addr %s29, 8
    %s31 = scalar_lea.vmem %s0, %s30
    %s32 = sadd.s32 0, 0
    %p33 = scmp.lt.s32.totalorder %s32, 0
    %s34 = scalar_select %p33, %s32, 0
    %p35 = scmp.lt.s32.totalorder %s34, 0
    %s36 = scalar_select %p35, %s34, 0
    %s37 = smul.addr %s36, 8
    %s38 = scalar_lea.vmem %s0, %s37
    %s39 = sadd.s32 0, 0
    %p40 = scmp.lt.s32.totalorder %s39, 0
    %s41 = scalar_select %p40, %s39, 0
    %p42 = scmp.eq.s32.totalorder 0, 0
    // Predicated region
    $region10: #{tpu_custom_call.1} parent=1 // pred_check
      %p43 = pneg %p42
    $region11: #{tpu_custom_call.1} parent=1 // pred_check_branch
      %45 = sbr.rel (%p43) target = $region13
    $region12: #{tpu_custom_call.1} parent=1 // pred_region
      %vm46 = vcmask 261120
      %47 = vst.msk [vmem:[#allocation2] sm:$0xff] %vm46, 0.0
      %v48 = vld [vmem:[%s1] sm:$0xff]
      %v49 = vsub.f32 0.0, %v48
      %v50 = vmax.f32 %v49, 0.0
      %v51 = vand.u32 2147483647, %v49
      %v52 = vsub.f32 0.0, %v51
      %v53 = vmul.f32 %v52, 1.442695
      %v54 = vpow.pop %v53
      %v55 = vadd.f32 %v54, 1.0
      %v56 = vlog2.pop %v55
      %v57 = vmul.f32 %v56, 0.6931472
      %v58 = vmul.f32 -0.5, %v54
      %v59 = vadd.f32 %v58, 1.0
      %v60 = vmul.f32 %v59, %v54
      %v61 = vand.u32 2147483647, %v54
      %vm62 = vcmp.lt.f32.partialorder %v61, 0.0004427343
      %v63 = vsel %vm62, %v60, %v57
      %v64 = vadd.f32 %v50, %v63
      %vm65 = vcmask 7168
      %v66 = vsel %vm65, %v64, 0.0
      %67 = vadd.xlane.f32.xlu0 %v66
      %v68 = vpop.xlane.xlu0 %67
      %v69 = vrot.slane %v68, 4
      %v70 = vadd.f32 %v68, %v69
      %v71 = vrot.slane %v70, 2
      %v72 = vadd.f32 %v70, %v71
      %v73 = vrot.slane %v72, 1
      %v74 = vadd.f32 %v72, %v73
      %s75 = vtos %v74
      %p76 = scmp.eq.s32.totalorder 0, 0
      %s77 = scalar_select %p76, %s75, 0.0
      %v78 = vstv %s77
      %79 = vst [vmem:[#allocation4] sm:$0xff] %v78
    $region13: #{tpu_custom_call.1} parent=1 // pred_fallthru
      _
    %v80 = vld [vmem:[%s38] sm:$0xff]
    %v81 = vmax.f32 %v80, 0.0
    %v82 = vand.u32 2147483647, %v80
    %v83 = vsub.f32 0.0, %v82
    %v84 = vmul.f32 %v83, 1.442695
    %v85 = vpow.pop %v84
    %v86 = vadd.f32 %v85, 1.0
    %v87 = vlog2.pop %v86
    %v88 = vmul.f32 %v87, 0.6931472
    %v89 = vmul.f32 -0.5, %v85
    %v90 = vadd.f32 %v89, 1.0
    %v91 = vmul.f32 %v90, %v85
    %v92 = vand.u32 2147483647, %v85
    %vm93 = vcmp.lt.f32.partialorder %v92, 0.0004427343
    %v94 = vsel %vm93, %v91, %v88
    %v95 = vadd.f32 %v81, %v94
    %v96 = vld [vmem:[#allocation2] sm:$0x1]
    %vm97 = vcmask 261120
    %v98 = vsel %vm97, %v95, 0.0
    %v99 = vrot.slane %v98, 4
    %v100 = vadd.f32 %v98, %v99
    %v101 = vrot.slane %v100, 2
    %v102 = vadd.f32 %v100, %v101
    %v103 = vrot.slane %v102, 1
    %v104 = vadd.f32 %v102, %v103
    %v105 = vadd.f32 %v96, %v104
    %vm106 = vcmask 253952
    %107 = vst.msk [vmem:[#allocation2] sm:$0x1] %vm106, %v105
    // Predicated region
    $region14: #{tpu_custom_call.1} parent=1 // pred_check
      _
    $region15: #{tpu_custom_call.1} parent=1 // pred_check_branch
      %109 = sbr.rel (0) target = $region17
    $region16: #{tpu_custom_call.1} parent=1 // pred_region
      %s111 = ssub.s32 128, 128
      %112 = vsyncadd [#allocation3], %s111
      %s114 = sshll.u32 [#allocation2], 4
      %s115 = int_to_ptr.vmem [resolvable:$true] %s114
      %117 = dma.vmem_to_hbm [thread:$0]  %s115, 128, %s2, [#allocation3]
    $region17: #{tpu_custom_call.1} parent=1 // pred_fallthru
      _
    // Predicated region
    $region18: #{tpu_custom_call.1} parent=1 // pred_check
      _
    $region19: #{tpu_custom_call.1} parent=1 // pred_check_branch
      %119 = sbr.rel (0) target = $region21
    $region20: #{tpu_custom_call.1} parent=1 // pred_region
      %s121 = ssub.s32 128, 128
      %122 = vsyncadd [#allocation5], %s121
      %s124 = sshll.u32 [#allocation4], 4
      %s125 = int_to_ptr.vmem [resolvable:$true] %s124
      %127 = dma.vmem_to_hbm [thread:$0]  %s125, 128, %s3, [#allocation5]
    $region21: #{tpu_custom_call.1} parent=1 // pred_fallthru
      _
    // Predicated region
    $region22: #{tpu_custom_call.1} parent=1 // pred_check
      _
    $region23: #{tpu_custom_call.1} parent=1 // pred_check_branch
      %129 = sbr.rel (0) target = $region25
    $region24: #{tpu_custom_call.1} parent=1 // pred_region
      %130 = dma.done [#allocation3], 128
    $region25: #{tpu_custom_call.1} parent=1 // pred_fallthru
      _
    // Predicated region
    $region26: #{tpu_custom_call.1} parent=1 // pred_check
      _
    $region27: #{tpu_custom_call.1} parent=1 // pred_check_branch
      %132 = sbr.rel (0) target = $region29
    $region28: #{tpu_custom_call.1} parent=1 // pred_region
      %133 = dma.done [#allocation5], 128
    $region29: #{tpu_custom_call.1} parent=1 // pred_fallthru
      _
    %134 = vsyncpa [#allocation3], 1
    %135 = vsyncpa [#allocation5], 1

</llo_original>
